<compile_context>
chip_gen: v6e
topology: v6e:2x2x1
jax: 0.10.0
libtpu: 0.0.40
codegen_flags: <defaults>
</compile_context>

<pallas_src>
import functools

import jax
import jax.numpy as jnp
from jax.experimental import pallas as pl
from jax.experimental.pallas import tpu as pltpu


def _round_up(x, m):
    return (x + m - 1) // m * m


# ---------------------------------------------------------------------------
# Kernel
# ---------------------------------------------------------------------------
def _policy_kernel(x_ref, w_ref, aux_ref, out_ref, *, s_dim, s_pad, w_pad, o_pad):
    """x_ref:   [TB, S]                f32 batch tile
       w_ref:   [S_pad + 2*W_pad, W_pad]   packed weights (f32 or bf16)
       aux_ref: [8, W_pad]             f32: b1 | b2 | bh | clamp_lo | clamp_hi | 0...
       out_ref: [TB, O_pad]            f32 lane-dense [mean | log_std | 0-pad]."""
    wdt = w_ref.dtype

    # Tile-aligned, full-width views of the packed slab (no narrow lane slices).
    w1 = w_ref[0:s_dim, :]                                  # [S,  W_pad]
    w2 = w_ref[s_pad:s_pad + w_pad, :]                      # [W_pad, W_pad]
    wh = w_ref[s_pad + w_pad:s_pad + 2 * w_pad, 0:o_pad]    # [W_pad, O_pad]

    b1 = aux_ref[0:1, :]                                    # [1, W_pad] f32
    b2 = aux_ref[1:2, :]
    bh = aux_ref[2:3, 0:o_pad]                              # [1, O_pad] f32
    lo = aux_ref[3:4, 0:o_pad]                              # per-lane clamp bounds
    hi = aux_ref[4:5, 0:o_pad]

    x = x_ref[...]                                          # f32 activations

    # Linear(S -> H) + ReLU   (weight-dtype MXU inputs, f32 accumulation)
    h1 = jnp.dot(x.astype(wdt), w1, preferred_element_type=jnp.float32) + b1
    h1 = jnp.maximum(h1, 0.0)

    # Linear(H -> H) + ReLU   (padded lanes of h1 are exact zeros; w2 pad rows are 0)
    h2 = jnp.dot(h1.astype(wdt), w2, preferred_element_type=jnp.float32) + b2
    h2 = jnp.maximum(h2, 0.0)

    # Fused heads: one matmul producing [mean | log_std | 0-pad] lane-dense.
    heads = jnp.dot(h2.astype(wdt), wh, preferred_element_type=jnp.float32) + bh

    # Per-lane clamp: mean lanes pass through (+-1e30), log_std lanes clip to [-20, 2].
    out_ref[...] = jnp.minimum(jnp.maximum(heads, lo), hi).astype(out_ref.dtype)


# ---------------------------------------------------------------------------
# Parameter packing (done once, outside the hot path)
# ---------------------------------------------------------------------------
def pack_params(params, weight_dtype=jnp.bfloat16):
    """Pack weights into one lane-dense slab + a tiny f32 aux array.

    slab [S_pad + 2*W_pad, W_pad] (weight_dtype), tile-aligned segments:
        rows [0, S)                       : W1  (cols zero-padded to W_pad)
        rows [S_pad, S_pad+W_pad)         : W2  (rows/cols zero-padded)
        rows [S_pad+W_pad, S_pad+2*W_pad) : [Wm | Ws] (rows/cols zero-padded)
    aux  [8, W_pad] f32: b1 | b2 | [bm|bs] | clamp_lo | clamp_hi | zeros."""
    w1, b1 = params["w1"], params["b1"]
    w2, b2 = params["w2"], params["b2"]
    wm, bm = params["wm"], params["bm"]
    ws, bs = params["ws"], params["bs"]
    S, H = w1.shape
    A = wm.shape[1]

    W_pad = max(_round_up(H, 128), _round_up(2 * A, 128))   # hidden/lane width
    O_pad = _round_up(2 * A, 128)                            # head/output width
    S_pad = _round_up(S, 16)                                 # segment alignment (f32 & bf16)

    def pad_to(a, rows, cols):
        return jnp.pad(a, ((0, rows - a.shape[0]), (0, cols - a.shape[1])))

    wh = jnp.concatenate([wm, ws], axis=1)                   # [H, 2A]
    slab = jnp.concatenate([
        pad_to(w1, S_pad, W_pad),
        pad_to(w2, W_pad, W_pad),
        pad_to(wh, W_pad, W_pad),
    ], axis=0).astype(weight_dtype)

    bh = jnp.concatenate([bm, bs], axis=1)                   # [1, 2A]
    BIG = jnp.float32(1e30)
    lane = jnp.arange(W_pad, dtype=jnp.int32)
    is_log_std = (lane >= A) & (lane < 2 * A)
    lo = jnp.where(is_log_std, jnp.float32(-20.0), -BIG)[None, :]
    hi = jnp.where(is_log_std, jnp.float32(2.0), BIG)[None, :]
    aux = jnp.concatenate([
        pad_to(b1.astype(jnp.float32), 1, W_pad),
        pad_to(b2.astype(jnp.float32), 1, W_pad),
        pad_to(bh.astype(jnp.float32), 1, W_pad),
        lo, hi,
        jnp.zeros((3, W_pad), jnp.float32),
    ], axis=0)

    meta = dict(S=S, H=H, A=A, S_pad=S_pad, W_pad=W_pad, O_pad=O_pad)
    return slab, aux, meta


# ---------------------------------------------------------------------------
# Wrapper
# ---------------------------------------------------------------------------
def _pick_batch_tile(B, batch_tile):
    if B <= batch_tile:
        if B >= 512:
            # Ensure >= 2 grid steps so the "parallel" batch axis can shard
            # across both TensorCores on v7x (no cost on single-TC v5e/v6e).
            return min(batch_tile, _round_up(pl.cdiv(B, 2), 8))
        return B
    return batch_tile


def policy_network_forward(state, slab, aux, meta, *, batch_tile=2048):
    """state: [B, state_dim] f32. Returns (mean [B, A], log_std [B, A]) f32."""
    B, S = state.shape
    assert S == meta["S"]
    S_pad, W_pad, O_pad, A = meta["S_pad"], meta["W_pad"], meta["O_pad"], meta["A"]
    R = slab.shape[0]

    TB = _pick_batch_tile(B, batch_tile)
    grid = (pl.cdiv(B, TB),)

    kernel = functools.partial(_policy_kernel, s_dim=S, s_pad=S_pad,
                               w_pad=W_pad, o_pad=O_pad)

    # Generous but bounded scoped-VMEM cap (slab + double-buffered x/out + activations).
    wbytes = jnp.dtype(slab.dtype).itemsize
    vmem_est = (2 * TB * S * 4 + 2 * R * W_pad * wbytes + 2 * 8 * W_pad * 4
                + 2 * TB * O_pad * 4 + 4 * TB * W_pad * 4)
    vmem_limit = int(min(max(2 * vmem_est, 32 << 20), 64 << 20))

    out = pl.pallas_call(
        kernel,
        out_shape=jax.ShapeDtypeStruct((B, O_pad), jnp.float32),
        grid=grid,
        in_specs=[
            # Batch tile streams through VMEM (double-buffered by Pallas).
            pl.BlockSpec((TB, S), lambda i: (i, 0)),
            # Packed weight slab: constant index -> fetched once, VMEM-resident.
            pl.BlockSpec((R, W_pad), lambda i: (0, 0)),
            # Tiny f32 aux (biases + clamp bounds): constant index, resident.
            pl.BlockSpec((8, W_pad), lambda i: (0, 0)),
        ],
        # Lane-dense output block (O_pad is a multiple of 128).
        out_specs=pl.BlockSpec((TB, O_pad), lambda i: (i, 0)),
        compiler_params=pltpu.CompilerParams(
            dimension_semantics=("parallel",),
            vmem_limit_bytes=vmem_limit),
    )(state, slab, aux)

    return out[:, :A], out[:, A:2 * A]


# ---------------------------------------------------------------------------
# Init + pure-JAX reference (same weight dtype / cast order as the kernel)
# ---------------------------------------------------------------------------
def init_params(key, state_dim, action_dim, hidden_dim):
    """Mimics PyTorch Linear init: uniform(-1/sqrt(fan_in), 1/sqrt(fan_in))."""
    ks = jax.random.split(key, 8)

    def lin(kw, kb, fan_in, fan_out):
        bound = 1.0 / jnp.sqrt(fan_in)
        w = jax.random.uniform(kw, (fan_in, fan_out), jnp.float32, -bound, bound)
        b = jax.random.uniform(kb, (1, fan_out), jnp.float32, -bound, bound)
        return w, b

    w1, b1 = lin(ks[0], ks[1], state_dim, hidden_dim)
    w2, b2 = lin(ks[2], ks[3], hidden_dim, hidden_dim)
    wm, bm = lin(ks[4], ks[5], hidden_dim, action_dim)
    ws, bs = lin(ks[6], ks[7], hidden_dim, action_dim)
    return {"w1": w1, "b1": b1, "w2": w2, "b2": b2,
            "wm": wm, "bm": bm, "ws": ws, "bs": bs}


def reference_forward(state, params, *, weight_dtype=jnp.float32):
    wdt = weight_dtype

    def lin(x, w, b):
        return jnp.dot(x.astype(wdt), w.astype(wdt),
                       preferred_element_type=jnp.float32) + b.astype(jnp.float32)

    h1 = jnp.maximum(lin(state, params["w1"], params["b1"]), 0.0)
    h2 = jnp.maximum(lin(h1, params["w2"], params["b2"]), 0.0)
    mean = lin(h2, params["wm"], params["bm"])
    log_std = jnp.clip(lin(h2, params["ws"], params["bs"]), -20.0, 2.0)
    return mean, log_std


if __name__ == "__main__":
    key = jax.random.PRNGKey(0)
    k_params, k_state = jax.random.split(key)

    B, state_dim, action_dim, hidden_dim = 8, 16, 4, 32
    params = init_params(k_params, state_dim, action_dim, hidden_dim)
    state = jax.random.normal(k_state, (B, state_dim), jnp.float32)

    # --- f32 weight storage ---
    slab32, aux32, meta32 = pack_params(params, jnp.float32)
    mean32, log_std32 = policy_network_forward(state, slab32, aux32, meta32)
    jax.block_until_ready((mean32, log_std32))
    ref_m32, ref_l32 = reference_forward(state, params, weight_dtype=jnp.float32)
    assert mean32.shape == (B, action_dim) and log_std32.shape == (B, action_dim)
    assert jnp.allclose(mean32, ref_m32, atol=1e-2, rtol=1e-2)
    assert jnp.allclose(log_std32, ref_l32, atol=1e-2, rtol=1e-2)

    # --- bf16 weight storage (v6e/v7x fast path); biases & accumulation stay f32 ---
    slab16, aux16, meta16 = pack_params(params, jnp.bfloat16)
    mean16, log_std16 = policy_network_forward(state, slab16, aux16, meta16)
    jax.block_until_ready((mean16, log_std16))
    ref_m16, ref_l16 = reference_forward(state, params, weight_dtype=jnp.bfloat16)
    assert jnp.allclose(mean16, ref_m16, atol=3e-2, rtol=3e-2)
    assert jnp.allclose(log_std16, ref_l16, atol=3e-2, rtol=3e-2)

    # TODO(synk): sample_action (Normal.rsample + log_prob) remains in plain JAX —
    # only the deterministic forward (matmul/ReLU/clamp hot path) is in the kernel.
    print("KERNEL_OK")
</pallas_src>

<mosaic_0001>
module attributes {stable_mosaic.version = 11 : i64} {
  func.func @_policy_kernel(%arg0: i32, %arg1: memref<8x16xf32, #tpu.memory_space<vmem>>, %arg2: memref<272x128xf32, #tpu.memory_space<vmem>>, %arg3: memref<8x128xf32, #tpu.memory_space<vmem>>, %arg4: memref<8x128xf32, #tpu.memory_space<vmem>>) attributes {dimension_semantics = [#tpu.dimension_semantics<parallel>], iteration_bounds = array<i64: 1>, scalar_prefetch = 0 : i64, scratch_operands = 0 : i64, tpu.core_type = #tpu.core_type<tc>, window_params = [{transform_indices = @transform_0, window_bounds = array<i64: 8, 16>}, {pipeline_mode = #tpu.pipeline_mode<synchronous>, transform_indices = @transform_1, window_bounds = array<i64: 272, 128>}, {pipeline_mode = #tpu.pipeline_mode<synchronous>, transform_indices = @transform_2, window_bounds = array<i64: 8, 128>}, {transform_indices = @transform_3, window_bounds = array<i64: 8, 128>}]} {
    %c0 = arith.constant 0 : index
    %c0_0 = arith.constant 0 : index
    %0 = vector.load %arg2[%c0, %c0_0] : memref<272x128xf32, #tpu.memory_space<vmem>>, vector<16x128xf32>
    %c16 = arith.constant 16 : index
    %c0_1 = arith.constant 0 : index
    %1 = vector.load %arg2[%c16, %c0_1] : memref<272x128xf32, #tpu.memory_space<vmem>>, vector<128x128xf32>
    %c144 = arith.constant 144 : index
    %c0_2 = arith.constant 0 : index
    %2 = vector.load %arg2[%c144, %c0_2] : memref<272x128xf32, #tpu.memory_space<vmem>>, vector<128x128xf32>
    %c0_3 = arith.constant 0 : index
    %c0_4 = arith.constant 0 : index
    %3 = vector.load %arg3[%c0_3, %c0_4] : memref<8x128xf32, #tpu.memory_space<vmem>>, vector<1x128xf32>
    %c1 = arith.constant 1 : index
    %c0_5 = arith.constant 0 : index
    %4 = vector.load %arg3[%c1, %c0_5] : memref<8x128xf32, #tpu.memory_space<vmem>>, vector<1x128xf32>
    %c2 = arith.constant 2 : index
    %c0_6 = arith.constant 0 : index
    %5 = vector.load %arg3[%c2, %c0_6] : memref<8x128xf32, #tpu.memory_space<vmem>>, vector<1x128xf32>
    %c3 = arith.constant 3 : index
    %c0_7 = arith.constant 0 : index
    %6 = vector.load %arg3[%c3, %c0_7] : memref<8x128xf32, #tpu.memory_space<vmem>>, vector<1x128xf32>
    %c4 = arith.constant 4 : index
    %c0_8 = arith.constant 0 : index
    %7 = vector.load %arg3[%c4, %c0_8] : memref<8x128xf32, #tpu.memory_space<vmem>>, vector<1x128xf32>
    %c0_9 = arith.constant 0 : index
    %c0_10 = arith.constant 0 : index
    %8 = vector.load %arg1[%c0_9, %c0_10] : memref<8x16xf32, #tpu.memory_space<vmem>>, vector<8x16xf32>
    %cst = arith.constant dense<0.000000e+00> : vector<8x128xf32>
    %9 = tpu.matmul %8, %0, %cst {dimension_numbers = #tpu.dot_dimension_numbers<[1], [0], [0], [1], [0, 0, 1, 1], [], []>} : vector<8x16xf32>, vector<16x128xf32>, vector<8x128xf32> -> vector<8x128xf32>
    %10 = vector.broadcast %3 : vector<1x128xf32> to vector<8x128xf32>
    %11 = arith.addf %9, %10 : vector<8x128xf32>
    %cst_11 = arith.constant 0.000000e+00 : f32
    %12 = vector.broadcast %cst_11 : f32 to vector<8x128xf32>
    %13 = arith.maximumf %11, %12 : vector<8x128xf32>
    %cst_12 = arith.constant dense<0.000000e+00> : vector<8x128xf32>
    %14 = tpu.matmul %13, %1, %cst_12 {dimension_numbers = #tpu.dot_dimension_numbers<[1], [0], [0], [1], [0, 0, 1, 1], [], []>} : vector<8x128xf32>, vector<128x128xf32>, vector<8x128xf32> -> vector<8x128xf32>
    %15 = vector.broadcast %4 : vector<1x128xf32> to vector<8x128xf32>
    %16 = arith.addf %14, %15 : vector<8x128xf32>
    %cst_13 = arith.constant 0.000000e+00 : f32
    %17 = vector.broadcast %cst_13 : f32 to vector<8x128xf32>
    %18 = arith.maximumf %16, %17 : vector<8x128xf32>
    %cst_14 = arith.constant dense<0.000000e+00> : vector<8x128xf32>
    %19 = tpu.matmul %18, %2, %cst_14 {dimension_numbers = #tpu.dot_dimension_numbers<[1], [0], [0], [1], [0, 0, 1, 1], [], []>} : vector<8x128xf32>, vector<128x128xf32>, vector<8x128xf32> -> vector<8x128xf32>
    %20 = vector.broadcast %5 : vector<1x128xf32> to vector<8x128xf32>
    %21 = arith.addf %19, %20 : vector<8x128xf32>
    %22 = vector.broadcast %6 : vector<1x128xf32> to vector<8x128xf32>
    %23 = arith.maximumf %21, %22 : vector<8x128xf32>
    %24 = vector.broadcast %7 : vector<1x128xf32> to vector<8x128xf32>
    %25 = arith.minimumf %23, %24 : vector<8x128xf32>
    %c0_15 = arith.constant 0 : index
    %c0_16 = arith.constant 0 : index
    %26 = vector.load %arg4[%c0_15, %c0_16] : memref<8x128xf32, #tpu.memory_space<vmem>>, vector<8x128xf32>
    tpu.vector_store %arg4[%c0_15, %c0_16], %25 {strides = array<i32>} : memref<8x128xf32, #tpu.memory_space<vmem>>, vector<8x128xf32>,
    return
  }
  func.func @transform_0(%arg0: i32) -> (i32, i32) {
    %c0_i32 = arith.constant 0 : i32
    %c0_i32_0 = arith.constant 0 : i32
    return %arg0, %c0_i32 : i32, i32
  }
  func.func @transform_1(%arg0: i32) -> (i32, i32) {
    %c0_i32 = arith.constant 0 : i32
    %c0_i32_0 = arith.constant 0 : i32
    %c0_i32_1 = arith.constant 0 : i32
    return %c0_i32, %c0_i32_0 : i32, i32
  }
  func.func @transform_2(%arg0: i32) -> (i32, i32) {
    %c0_i32 = arith.constant 0 : i32
    %c0_i32_0 = arith.constant 0 : i32
    %c0_i32_1 = arith.constant 0 : i32
    return %c0_i32, %c0_i32_0 : i32, i32
  }
  func.func @transform_3(%arg0: i32) -> (i32, i32) {
    %c0_i32 = arith.constant 0 : i32
    %c0_i32_0 = arith.constant 0 : i32
    return %arg0, %c0_i32 : i32, i32
  }
}

</mosaic_0001>

<llo_original>
// kernel: tpu_custom_call.1
$region0: #{tpu_custom_call.1}
  #allocation0 [shape = 'u32[]', space=smem, size = 0x4, offset = 0x4, fixed_abs, tag = 'smem constant byte address 0x4 - core index']
  #allocation1 [shape = 'u32[144,128]{1,0:T(1,128)}', space=vmem, size = 0x12000, scoped, tag = 'internal scratch']
  %s0 = inlined_call_operand.hbm [shape: f32[8,16], index: 0, kind: input, shape index: {}]
  %s1 = inlined_call_operand.hbm [shape: f32[272,128], index: 1, kind: input, shape index: {}]
  %s2 = inlined_call_operand.hbm [shape: f32[8,128], index: 2, kind: input, shape index: {}]
  %s3 = inlined_call_operand.hbm [shape: f32[8,128], index: 3, kind: output, shape index: {}]
  %s4 = sld [smem:[#allocation0]]
  $region34: #{tpu_custom_call.1} parent=0
    _
  %s6 = ssub.s32 1, %s4
  %s7 = scalar_select 0, %s6, %s4
  $region1: #{tpu_custom_call.1} parent=0
    #allocation2 [shape = 'u8[4096]{0}', space=vmem, size = 0x1000, scoped, tag = 'input window, operand 0, single buffered']
    #allocation3 [shape = 's32[1]{0}', space=sflag, size = 0x4, scoped, tag = 'scoped memory for tpu_custom_call.1']
    #allocation4 [shape = 's32[1]{0}', space=sflag, size = 0x4, scoped, tag = 'scoped memory for tpu_custom_call.1']
    #allocation5 [shape = 'u8[139264]{0}', space=vmem, size = 0x22000, scoped, tag = 'input window, operand 1, single buffered']
    #allocation6 [shape = 's32[1]{0}', space=sflag, size = 0x4, scoped, tag = 'scoped memory for tpu_custom_call.1']
    #allocation7 [shape = 'u8[4096]{0}', space=vmem, size = 0x1000, scoped, tag = 'input window, operand 2, single buffered']
    #allocation8 [shape = 'u8[4096]{0}', space=vmem, size = 0x1000, scoped, tag = 'output window, operand 0, single buffered']
    %8 = vsyncpa [#allocation3], 0
    %9 = vsyncpa [#allocation6], 0
    %10 = vsyncpa [#allocation4], 0
    // Predicated region
    $region2: #{tpu_custom_call.1} parent=1 // pred_check
      _
    $region3: #{tpu_custom_call.1} parent=1 // pred_check_branch
      %12 = sbr.rel (0) target = $region5
    $region4: #{tpu_custom_call.1} parent=1 // pred_region
      %s14 = ssub.s32 128, 128
      %15 = vsyncadd [#allocation3], %s14
      %s17 = sshll.u32 [#allocation2], 4
      %s18 = int_to_ptr.vmem [resolvable:$true] %s17
      %20 = dma.hbm_to_vmem [thread:$0]  %s0, 128, %s18, [#allocation3]
    $region5: #{tpu_custom_call.1} parent=1 // pred_fallthru
      _
    // Predicated region
    $region6: #{tpu_custom_call.1} parent=1 // pred_check
      _
    $region7: #{tpu_custom_call.1} parent=1 // pred_check_branch
      %22 = sbr.rel (0) target = $region9
    $region8: #{tpu_custom_call.1} parent=1 // pred_region
      %s24 = ssub.s32 4352, 4352
      %25 = vsyncadd [#allocation6], %s24
      %s26 = sshll.u32 [#allocation5], 4
      %s27 = int_to_ptr.vmem [resolvable:$true] %s26
      %32 = dma.hbm_to_vmem [thread:$0]  %s1, 4352, %s27, [#allocation6], 128, 128, 8
    $region9: #{tpu_custom_call.1} parent=1 // pred_fallthru
      _
    // Predicated region
    $region10: #{tpu_custom_call.1} parent=1 // pred_check
      _
    $region11: #{tpu_custom_call.1} parent=1 // pred_check_branch
      %34 = sbr.rel (0) target = $region13
    $region12: #{tpu_custom_call.1} parent=1 // pred_region
      %s36 = ssub.s32 128, 128
      %37 = vsyncadd [#allocation6], %s36
      %s39 = sshll.u32 [#allocation7], 4
      %s40 = int_to_ptr.vmem [resolvable:$true] %s39
      %42 = dma.hbm_to_vmem [thread:$0]  %s2, 128, %s40, [#allocation6]
    $region13: #{tpu_custom_call.1} parent=1 // pred_fallthru
      _
    // Predicated region
    $region14: #{tpu_custom_call.1} parent=1 // pred_check
      _
    $region15: #{tpu_custom_call.1} parent=1 // pred_check_branch
      %44 = sbr.rel (0) target = $region17
    $region16: #{tpu_custom_call.1} parent=1 // pred_region
      %45 = dma.done [#allocation3], 128
    $region17: #{tpu_custom_call.1} parent=1 // pred_fallthru
      _
    // Predicated region
    $region18: #{tpu_custom_call.1} parent=1 // pred_check
      _
    $region19: #{tpu_custom_call.1} parent=1 // pred_check_branch
      %47 = sbr.rel (0) target = $region21
    $region20: #{tpu_custom_call.1} parent=1 // pred_region
      %48 = dma.done [#allocation6], 4352
    $region21: #{tpu_custom_call.1} parent=1 // pred_fallthru
      _
    // Predicated region
    $region22: #{tpu_custom_call.1} parent=1 // pred_check
      _
    $region23: #{tpu_custom_call.1} parent=1 // pred_check_branch
      %50 = sbr.rel (0) target = $region25
    $region24: #{tpu_custom_call.1} parent=1 // pred_region
      %51 = dma.done [#allocation6], 128
    $region25: #{tpu_custom_call.1} parent=1 // pred_fallthru
      _
    %v52 = vld [vmem:[#allocation5] sm:$0xff]
    %v53 = vld [vmem:[#allocation5 + $0x8] sm:$0xff]
    %v54 = vld [vmem:[#allocation5 + $0x10] sm:$0xff]
    %v55 = vld [vmem:[#allocation5 + $0x18] sm:$0xff]
    %v56 = vld [vmem:[#allocation5 + $0x20] sm:$0xff]
    %v57 = vld [vmem:[#allocation5 + $0x28] sm:$0xff]
    %v58 = vld [vmem:[#allocation5 + $0x30] sm:$0xff]
    %v59 = vld [vmem:[#allocation5 + $0x38] sm:$0xff]
    %v60 = vld [vmem:[#allocation5 + $0x40] sm:$0xff]
    %v61 = vld [vmem:[#allocation5 + $0x48] sm:$0xff]
    %v62 = vld [vmem:[#allocation5 + $0x50] sm:$0xff]
    %v63 = vld [vmem:[#allocation5 + $0x58] sm:$0xff]
    %v64 = vld [vmem:[#allocation5 + $0x60] sm:$0xff]
    %v65 = vld [vmem:[#allocation5 + $0x68] sm:$0xff]
    %v66 = vld [vmem:[#allocation5 + $0x70] sm:$0xff]
    %v67 = vld [vmem:[#allocation5 + $0x78] sm:$0xff]
    %v68 = vld [vmem:[#allocation5 + $0x80] sm:$0xff]
    %v69 = vld [vmem:[#allocation5 + $0x88] sm:$0xff]
    %v70 = vld [vmem:[#allocation5 + $0x90] sm:$0xff]
    %v71 = vld [vmem:[#allocation5 + $0x98] sm:$0xff]
    %v72 = vld [vmem:[#allocation5 + $0xa0] sm:$0xff]
    %v73 = vld [vmem:[#allocation5 + $0xa8] sm:$0xff]
    %v74 = vld [vmem:[#allocation5 + $0xb0] sm:$0xff]
    %v75 = vld [vmem:[#allocation5 + $0xb8] sm:$0xff]
    %v76 = vld [vmem:[#allocation5 + $0xc0] sm:$0xff]
    %v77 = vld [vmem:[#allocation5 + $0xc8] sm:$0xff]
    %v78 = vld [vmem:[#allocation5 + $0xd0] sm:$0xff]
    %v79 = vld [vmem:[#allocation5 + $0xd8] sm:$0xff]
    %v80 = vld [vmem:[#allocation5 + $0xe0] sm:$0xff]
    %v81 = vld [vmem:[#allocation5 + $0xe8] sm:$0xff]
    %v82 = vld [vmem:[#allocation5 + $0xf0] sm:$0xff]
    %v83 = vld [vmem:[#allocation5 + $0xf8] sm:$0xff]
    %v84 = vld [vmem:[#allocation5 + $0x100] sm:$0xff]
    %v85 = vld [vmem:[#allocation5 + $0x108] sm:$0xff]
    %v86 = vld [vmem:[#allocation7] sm:$0x1]
    %v87 = vld [vmem:[#allocation7 + $0x1] sm:$0x1]
    %v88 = vld [vmem:[#allocation7 + $0x2] sm:$0x1]
    %v89 = vld [vmem:[#allocation7 + $0x3] sm:$0x1]
    %v90 = vld [vmem:[#allocation7 + $0x4] sm:$0x1]
    %v91 = vld [vmem:[#allocation2] sm:$0xff]
    %v92 = vlaneseq
    %v93 = vshrl.u32 %v92, 7
    %v94 = vsub.s32 0, %v93
    %v95 = vrot.slane %v86, %v94
    %vm96 = vcmask 130048
    %v98 = vsel %vm96, %v91, 0
    %100 = vmatprep.subr.mxu0 0.0
    %101 = vmatpush1.msra.mxu0 0.0
    %102 = vmatprep.subr.mxu0 0.0
    %103 = vmatpush1.msra.mxu0 0.0
    %104 = vmatprep.subr.mxu0 0.0
    %105 = vmatpush1.msra.mxu0 0.0
    %106 = vmatprep.subr.mxu0 0.0
    %107 = vmatpush1.msra.mxu0 0.0
    %108 = vmatprep.subr.mxu0 0.0
    %109 = vmatpush1.msra.mxu0 0.0
    %110 = vmatprep.subr.mxu0 0.0
    %111 = vmatpush1.msra.mxu0 0.0
    %112 = vmatprep.subr.mxu0 0.0
    %113 = vmatpush1.msra.mxu0 0.0
    %114 = vmatprep.subr.mxu0 0.0
    %115 = vmatpush1.msra.mxu0 0.0
    %116 = vmatprep.subr.mxu0 0.0
    %117 = vmatpush1.msra.mxu0 0.0
    %118 = vmatprep.subr.mxu0 0.0
    %119 = vmatpush1.msra.mxu0 0.0
    %120 = vmatprep.subr.mxu0 0.0
    %121 = vmatpush1.msra.mxu0 0.0
    %122 = vmatprep.subr.mxu0 0.0
    %123 = vmatpush1.msra.mxu0 0.0
    %124 = vmatprep.subr.mxu0 0.0
    %125 = vmatpush1.msra.mxu0 0.0
    %126 = vmatprep.subr.mxu0 0.0
    %127 = vmatpush1.msra.mxu0 0.0
    %128 = vmatprep.subr.mxu0 0.0
    %129 = vmatpush1.msra.mxu0 %v53
    %130 = vmatprep.subr.mxu0 0.0
    %131 = vmatpush1.msra.mxu0 %v52
    %132 = vmatprep.subr.mxu0 0.0
    %133 = vmatpush2.msra.mxu0 0.0
    %134 = vmatprep.subr.mxu0 0.0
    %135 = vmatpush2.msra.mxu0 0.0
    %136 = vmatprep.subr.mxu0 0.0
    %137 = vmatpush2.msra.mxu0 0.0
    %138 = vmatprep.subr.mxu0 0.0
    %139 = vmatpush2.msra.mxu0 0.0
    %140 = vmatprep.subr.mxu0 0.0
    %141 = vmatpush2.msra.mxu0 0.0
    %142 = vmatprep.subr.mxu0 0.0
    %143 = vmatpush2.msra.mxu0 0.0
    %144 = vmatprep.subr.mxu0 0.0
    %145 = vmatpush2.msra.mxu0 0.0
    %146 = vmatprep.subr.mxu0 0.0
    %147 = vmatpush2.msra.mxu0 0.0
    %148 = vmatprep.subr.mxu0 0.0
    %149 = vmatpush2.msra.mxu0 0.0
    %150 = vmatprep.subr.mxu0 0.0
    %151 = vmatpush2.msra.mxu0 0.0
    %152 = vmatprep.subr.mxu0 0.0
    %153 = vmatpush2.msra.mxu0 0.0
    %154 = vmatprep.subr.mxu0 0.0
    %155 = vmatpush2.msra.mxu0 0.0
    %156 = vmatprep.subr.mxu0 0.0
    %157 = vmatpush2.msra.mxu0 0.0
    %158 = vmatprep.subr.mxu0 0.0
    %159 = vmatpush2.msra.mxu0 0.0
    %160 = vmatprep.subr.mxu0 0.0
    %161 = vmatpush2.msra.mxu0 0.0
    %162 = vmatprep.subr.mxu0 0.0
    %163 = vmatpush2.msra.mxu0 0.0
    %164 = vmatprep.mubr.f32.mxu0 0.0
    %165 = vmatmul.mubr.f32.gmra.mxu0 %v98
    %v166 = vpop.f32.mrf.mxu0
    %v167 = vadd.f32 %v95, %v166
    %v168 = vpop.f32.mrf.mxu0
    %169 = vdwg.mxu0
    %v170 = vmax.f32 %v167, 0.0
    %v171 = vlaneseq
    %v172 = vshrl.u32 %v171, 7
    %v173 = vsub.s32 0, %v172
    %v174 = vrot.slane %v87, %v173
    %175 = vmatprep.subr.mxu0 0.0
    %176 = vmatpush1.msra.mxu0 %v69
    %177 = vmatprep.subr.mxu0 0.0
    %178 = vmatpush1.msra.mxu0 %v68
    %179 = vmatprep.subr.mxu0 0.0
    %180 = vmatpush1.msra.mxu0 %v67
    %181 = vmatprep.subr.mxu0 0.0
    %182 = vmatpush1.msra.mxu0 %v66
    %183 = vmatprep.subr.mxu0 0.0
    %184 = vmatpush1.msra.mxu0 %v65
    %185 = vmatprep.subr.mxu0 0.0
    %186 = vmatpush1.msra.mxu0 %v64
    %187 = vmatprep.subr.mxu0 0.0
    %188 = vmatpush1.msra.mxu0 %v63
    %189 = vmatprep.subr.mxu0 0.0
    %190 = vmatpush1.msra.mxu0 %v62
    %191 = vmatprep.subr.mxu0 0.0
    %192 = vmatpush1.msra.mxu0 %v61
    %193 = vmatprep.subr.mxu0 0.0
    %194 = vmatpush1.msra.mxu0 %v60
    %195 = vmatprep.subr.mxu0 0.0
    %196 = vmatpush1.msra.mxu0 %v59
    %197 = vmatprep.subr.mxu0 0.0
    %198 = vmatpush1.msra.mxu0 %v58
    %199 = vmatprep.subr.mxu0 0.0
    %200 = vmatpush1.msra.mxu0 %v57
    %201 = vmatprep.subr.mxu0 0.0
    %202 = vmatpush1.msra.mxu0 %v56
    %203 = vmatprep.subr.mxu0 0.0
    %204 = vmatpush1.msra.mxu0 %v55
    %205 = vmatprep.subr.mxu0 0.0
    %206 = vmatpush1.msra.mxu0 %v54
    %207 = vmatprep.subr.mxu0 0.0
    %208 = vmatpush2.msra.mxu0 0.0
    %209 = vmatprep.subr.mxu0 0.0
    %210 = vmatpush2.msra.mxu0 0.0
    %211 = vmatprep.subr.mxu0 0.0
    %212 = vmatpush2.msra.mxu0 0.0
    %213 = vmatprep.subr.mxu0 0.0
    %214 = vmatpush2.msra.mxu0 0.0
    %215 = vmatprep.subr.mxu0 0.0
    %216 = vmatpush2.msra.mxu0 0.0
    %217 = vmatprep.subr.mxu0 0.0
    %218 = vmatpush2.msra.mxu0 0.0
    %219 = vmatprep.subr.mxu0 0.0
    %220 = vmatpush2.msra.mxu0 0.0
    %221 = vmatprep.subr.mxu0 0.0
    %222 = vmatpush2.msra.mxu0 0.0
    %223 = vmatprep.subr.mxu0 0.0
    %224 = vmatpush2.msra.mxu0 0.0
    %225 = vmatprep.subr.mxu0 0.0
    %226 = vmatpush2.msra.mxu0 0.0
    %227 = vmatprep.subr.mxu0 0.0
    %228 = vmatpush2.msra.mxu0 0.0
    %229 = vmatprep.subr.mxu0 0.0
    %230 = vmatpush2.msra.mxu0 0.0
    %231 = vmatprep.subr.mxu0 0.0
    %232 = vmatpush2.msra.mxu0 0.0
    %233 = vmatprep.subr.mxu0 0.0
    %234 = vmatpush2.msra.mxu0 0.0
    %235 = vmatprep.subr.mxu0 0.0
    %236 = vmatpush2.msra.mxu0 0.0
    %237 = vmatprep.subr.mxu0 0.0
    %238 = vmatpush2.msra.mxu0 0.0
    %239 = vmatprep.mubr.f32.mxu0 0.0
    %240 = vmatmul.mubr.f32.gmra.mxu0 %v170
    %v241 = vpop.f32.mrf.mxu0
    %v242 = vadd.f32 %v174, %v241
    %v243 = vpop.f32.mrf.mxu0
    %244 = vdwg.mxu0
    %v245 = vmax.f32 %v242, 0.0
    %v246 = vlaneseq
    %v247 = vshrl.u32 %v246, 7
    %v248 = vsub.s32 0, %v247
    %v249 = vrot.slane %v88, %v248
    %250 = vmatprep.subr.mxu0 0.0
    %251 = vmatpush1.msra.mxu0 %v85
    %252 = vmatprep.subr.mxu0 0.0
    %253 = vmatpush1.msra.mxu0 %v84
    %254 = vmatprep.subr.mxu0 0.0
    %255 = vmatpush1.msra.mxu0 %v83
    %256 = vmatprep.subr.mxu0 0.0
    %257 = vmatpush1.msra.mxu0 %v82
    %258 = vmatprep.subr.mxu0 0.0
    %259 = vmatpush1.msra.mxu0 %v81
    %260 = vmatprep.subr.mxu0 0.0
    %261 = vmatpush1.msra.mxu0 %v80
    %262 = vmatprep.subr.mxu0 0.0
    %263 = vmatpush1.msra.mxu0 %v79
    %264 = vmatprep.subr.mxu0 0.0
    %265 = vmatpush1.msra.mxu0 %v78
    %266 = vmatprep.subr.mxu0 0.0
    %267 = vmatpush1.msra.mxu0 %v77
    %268 = vmatprep.subr.mxu0 0.0
    %269 = vmatpush1.msra.mxu0 %v76
    %270 = vmatprep.subr.mxu0 0.0
    %271 = vmatpush1.msra.mxu0 %v75
    %272 = vmatprep.subr.mxu0 0.0
    %273 = vmatpush1.msra.mxu0 %v74
    %274 = vmatprep.subr.mxu0 0.0
    %275 = vmatpush1.msra.mxu0 %v73
    %276 = vmatprep.subr.mxu0 0.0
    %277 = vmatpush1.msra.mxu0 %v72
    %278 = vmatprep.subr.mxu0 0.0
    %279 = vmatpush1.msra.mxu0 %v71
    %280 = vmatprep.subr.mxu0 0.0
    %281 = vmatpush1.msra.mxu0 %v70
    %282 = vmatprep.subr.mxu0 0.0
    %283 = vmatpush2.msra.mxu0 0.0
    %284 = vmatprep.subr.mxu0 0.0
    %285 = vmatpush2.msra.mxu0 0.0
    %286 = vmatprep.subr.mxu0 0.0
    %287 = vmatpush2.msra.mxu0 0.0
    %288 = vmatprep.subr.mxu0 0.0
    %289 = vmatpush2.msra.mxu0 0.0
    %290 = vmatprep.subr.mxu0 0.0
    %291 = vmatpush2.msra.mxu0 0.0
    %292 = vmatprep.subr.mxu0 0.0
    %293 = vmatpush2.msra.mxu0 0.0
    %294 = vmatprep.subr.mxu0 0.0
    %295 = vmatpush2.msra.mxu0 0.0
    %296 = vmatprep.subr.mxu0 0.0
    %297 = vmatpush2.msra.mxu0 0.0
    %298 = vmatprep.subr.mxu0 0.0
    %299 = vmatpush2.msra.mxu0 0.0
    %300 = vmatprep.subr.mxu0 0.0
    %301 = vmatpush2.msra.mxu0 0.0
    %302 = vmatprep.subr.mxu0 0.0
    %303 = vmatpush2.msra.mxu0 0.0
    %304 = vmatprep.subr.mxu0 0.0
    %305 = vmatpush2.msra.mxu0 0.0
    %306 = vmatprep.subr.mxu0 0.0
    %307 = vmatpush2.msra.mxu0 0.0
    %308 = vmatprep.subr.mxu0 0.0
    %309 = vmatpush2.msra.mxu0 0.0
    %310 = vmatprep.subr.mxu0 0.0
    %311 = vmatpush2.msra.mxu0 0.0
    %312 = vmatprep.subr.mxu0 0.0
    %313 = vmatpush2.msra.mxu0 0.0
    %314 = vmatprep.mubr.f32.mxu0 0.0
    %315 = vmatmul.mubr.f32.gmra.mxu0 %v245
    %v316 = vpop.f32.mrf.mxu0
    %v317 = vadd.f32 %v249, %v316
    %v318 = vpop.f32.mrf.mxu0
    %319 = vdwg.mxu0
    %v320 = vlaneseq
    %v321 = vshrl.u32 %v320, 7
    %v322 = vsub.s32 0, %v321
    %v323 = vrot.slane %v89, %v322
    %v324 = vmax.f32 %v317, %v323
    %v325 = vlaneseq
    %v326 = vshrl.u32 %v325, 7
    %v327 = vsub.s32 0, %v326
    %v328 = vrot.slane %v90, %v327
    %v329 = vmin.f32 %v324, %v328
    %330 = vst [vmem:[#allocation8] sm:$0xff] %v329
    // Predicated region
    $region26: #{tpu_custom_call.1} parent=1 // pred_check
      _
    $region27: #{tpu_custom_call.1} parent=1 // pred_check_branch
      %332 = sbr.rel (0) target = $region29
    $region28: #{tpu_custom_call.1} parent=1 // pred_region
      %s334 = ssub.s32 128, 128
      %335 = vsyncadd [#allocation4], %s334
      %s337 = sshll.u32 [#allocation8], 4
      %s338 = int_to_ptr.vmem [resolvable:$true] %s337
      %340 = dma.vmem_to_hbm [thread:$0]  %s338, 128, %s3, [#allocation4]
    $region29: #{tpu_custom_call.1} parent=1 // pred_fallthru
      _
    // Predicated region
    $region30: #{tpu_custom_call.1} parent=1 // pred_check
      _
    $region31: #{tpu_custom_call.1} parent=1 // pred_check_branch
      %342 = sbr.rel (0) target = $region33
    $region32: #{tpu_custom_call.1} parent=1 // pred_region
      %343 = dma.done [#allocation4], 128
    $region33: #{tpu_custom_call.1} parent=1 // pred_fallthru
      _
    %344 = vsyncpa [#allocation3], 1
    %345 = vsyncpa [#allocation6], 1
    %346 = vsyncpa [#allocation4], 1

</llo_original>
